<compile_context>
chip_gen: v5e
topology: v5e:2x2
jax: 0.10.0
libtpu: 0.0.40
codegen_flags: <defaults>
</compile_context>

<pallas_src>
import math
import functools

import jax
import jax.numpy as jnp
from jax import lax
from jax.experimental import pallas as pl
from jax.experimental.pallas import tpu as pltpu


_NEG_LOG_1E4 = -math.log(10000.0)
_HALF_PI = math.pi / 2.0
_RESTART_ROWS = 64       # re-seed the sin/cos recurrence every 64 rows
_MAX_RECUR_COLS = 1024   # vreg-pressure gate for the recurrence kernel
_MAX_FLAT_COLS = 512     # lane-widening cap for the flat lane-dense layout


# ---------------------------------------------------------------------------
# Kernels.  angle(row r, lane l) = r * a_row[l] + b_row[l];  pe = sin(angle).
# a_row / b_row (and cosd/sind for the recurrence) are precomputed in the
# wrapper and fed with a constant index_map, so they stay resident in VMEM.
# ---------------------------------------------------------------------------

def _pe_kernel_simple(a_ref, b_ref, o_ref, *, row_tile):
    """1 mul + 1 add + 1 sin per element (small tiles / very wide cols)."""
    i = pl.program_id(0)
    pos = (lax.broadcasted_iota(jnp.int32, (row_tile, 1), 0)
           + i * row_tile).astype(jnp.float32)
    o_ref[...] = jnp.sin(pos * a_ref[...] + b_ref[...]).astype(o_ref.dtype)


def _pe_kernel_recur(a_ref, b_ref, cd_ref, sd_ref, o_ref, *, row_tile):
    """Angle-addition recurrence over 8-row groups, restarted every 64 rows.

    s' = s*cos(d) + c*sin(d),  c' = c*cos(d) - s*sin(d),  d = 8 * a_row.
    """
    i = pl.program_id(0)
    r0 = i * row_tile
    a = a_ref[...]
    b = b_ref[...]
    cd = cd_ref[...]
    sd = sd_ref[...]
    iota8 = lax.broadcasted_iota(jnp.int32, (8, 1), 0)

    n_restarts = row_tile // _RESTART_ROWS
    groups_per_restart = _RESTART_ROWS // 8

    def restart_body(rb, carry):
        local0 = rb * _RESTART_ROWS
        ang = (iota8 + (r0 + local0)).astype(jnp.float32) * a + b
        s = jnp.sin(ang)
        c = jnp.cos(ang)
        o_ref[pl.ds(pl.multiple_of(local0, 8), 8), :] = s.astype(o_ref.dtype)

        def grp_body(g, sc):
            s_prev, c_prev = sc
            s_new = s_prev * cd + c_prev * sd
            c_new = c_prev * cd - s_prev * sd
            o_ref[pl.ds(pl.multiple_of(local0 + g * 8, 8), 8), :] = (
                s_new.astype(o_ref.dtype))
            return (s_new, c_new)

        lax.fori_loop(1, groups_per_restart, grp_body, (s, c), unroll=True)
        return carry

    if n_restarts > 0:
        lax.fori_loop(0, n_restarts, restart_body, 0)

    tail = row_tile - n_restarts * _RESTART_ROWS
    if tail > 0:  # static; handles row_tile not a multiple of 64
        local0 = n_restarts * _RESTART_ROWS
        ang = (lax.broadcasted_iota(jnp.int32, (tail, 1), 0)
               + (r0 + local0)).astype(jnp.float32) * a + b
        o_ref[pl.ds(local0, tail), :] = jnp.sin(ang).astype(o_ref.dtype)


# ---------------------------------------------------------------------------
# Wrapper: layout / tiling selection + memoized table build.
# ---------------------------------------------------------------------------

def _tpu_generation_params():
    kind = ""
    try:
        kind = jax.devices()[0].device_kind.lower()
    except Exception:
        pass
    if "v6" in kind:
        # 32 MiB scoped-VMEM default / 128 MiB physical: bigger output tiles.
        return {"block_cap": 12 << 20, "force_split": False, "vmem_limit": 64 << 20}
    if "7x" in kind or "v7" in kind:
        # 64 MiB physical VMEM, 2 TensorCores: modest tiles, >=2 parallel steps.
        return {"block_cap": 8 << 20, "force_split": True, "vmem_limit": None}
    # v5e / unknown: conservative (16 MiB scoped default, lowest HBM BW).
    return {"block_cap": 4 << 20, "force_split": False, "vmem_limit": None}


def _choose_layout(seq_len, d_model):
    """Returns (rows, cols, per_row): a lane-dense (rows, cols) slab whose
    row-major order equals the row-major (seq_len, d_model) table."""
    total = seq_len * d_model
    if d_model % 128 == 0:
        return seq_len, d_model, 1
    cols = (d_model * 128) // math.gcd(d_model, 128)      # lcm(d_model, 128)
    if total % cols == 0:
        while cols * 2 <= _MAX_FLAT_COLS and total % (cols * 2) == 0:
            cols *= 2
        return total // cols, cols, cols // d_model
    # Fallback: lane-sparse but correct (masked partial stores).
    return seq_len, d_model, 1


def _choose_row_tile(rows, cols, gen):
    bytes_per_row = cols * 4
    max_rows = max(8, gen["block_cap"] // bytes_per_row)
    if gen["force_split"] and rows >= 16 and rows * bytes_per_row >= (64 << 10):
        # v7x: make sure there are >= 2 parallel grid steps for the 2 TCs.
        max_rows = min(max_rows, max(8, rows // 2))
    if max_rows >= rows:
        return rows
    row_tile = max_rows
    if row_tile >= _RESTART_ROWS:
        row_tile -= row_tile % _RESTART_ROWS
    else:
        row_tile -= row_tile % 8
    return row_tile if row_tile >= 8 else rows


@functools.lru_cache(maxsize=None)
def _build_pe_table(seq_len, d_model, out_dtype_name="float32",
                    _force_row_tile=None):
    """Builds pe[:, :seq_len] of shape (1, seq_len, d_model).  Memoized — the
    table depends only on (seq_len, d_model), so repeated forward calls are free."""
    assert d_model % 2 == 0, "d_model must be even (as in the PyTorch module)"
    out_dtype = jnp.dtype(out_dtype_name)

    rows, cols, per_row = _choose_layout(seq_len, d_model)
    gen = _tpu_generation_params()
    row_tile = (_force_row_tile if _force_row_tile is not None
                else _choose_row_tile(rows, cols, gen))
    grid = (pl.cdiv(rows, row_tile),)

    # Per-lane rows, hoisted out of the grid loop (constant block index).
    lane = jnp.arange(cols, dtype=jnp.int32)
    feat = lane % d_model
    odd = feat & 1
    k2 = (feat - odd).astype(jnp.float32)
    div_term = jnp.exp(k2 * jnp.float32(_NEG_LOG_1E4 / d_model))
    pos_lane = (lane // d_model).astype(jnp.float32)
    a_row = (jnp.float32(per_row) * div_term)[None, :]                   # d(angle)/d(row)
    b_row = (pos_lane * div_term
             + odd.astype(jnp.float32) * jnp.float32(_HALF_PI))[None, :]  # cos = sin(x+pi/2)

    use_recur = (row_tile >= _RESTART_ROWS) and (cols <= _MAX_RECUR_COLS)

    row_spec = pl.BlockSpec((1, cols), lambda i: (0, 0))
    if use_recur:
        delta = jnp.float32(8.0) * a_row
        cd_row = jnp.cos(delta)
        sd_row = jnp.sin(delta)
        kernel = functools.partial(_pe_kernel_recur, row_tile=row_tile)
        inputs = (a_row, b_row, cd_row, sd_row)
        in_specs = [row_spec] * 4
    else:
        kernel = functools.partial(_pe_kernel_simple, row_tile=row_tile)
        inputs = (a_row, b_row)
        in_specs = [row_spec] * 2

    cp_kwargs = dict(dimension_semantics=("parallel",))
    if gen["vmem_limit"] is not None:
        cp_kwargs["vmem_limit_bytes"] = gen["vmem_limit"]

    pe = pl.pallas_call(
        kernel,
        out_shape=jax.ShapeDtypeStruct((rows, cols), out_dtype),
        grid_spec=pltpu.PrefetchScalarGridSpec(
            num_scalar_prefetch=0,
            grid=grid,
            in_specs=in_specs,
            out_specs=pl.BlockSpec((row_tile, cols), lambda i: (i, 0)),
        ),
        compiler_params=pltpu.CompilerParams(**cp_kwargs),
    )(*inputs)

    # Row-major reshape: the (rows, cols) slab is element-for-element the
    # (seq_len, d_model) table; XLA lowers this to a bitcast (no extra HBM copy).
    return pe.reshape(1, seq_len, d_model)


def positional_embedding(x, d_model, max_len=512, out_dtype=jnp.float32):
    """Forward pass of the PyTorch module: returns pe[:, :x.shape[1]]."""
    seq_len = x.shape[1]
    assert seq_len <= max_len
    return _build_pe_table(int(seq_len), int(d_model), jnp.dtype(out_dtype).name)


# ---------------------------------------------------------------------------
# Reference + tests.
# ---------------------------------------------------------------------------

def _reference_pe(seq_len, d_model):
    position = jnp.arange(seq_len, dtype=jnp.float32)[:, None]
    div_term = jnp.exp(jnp.arange(0, d_model, 2, dtype=jnp.float32)
                       * (-math.log(10000.0) / d_model))
    pe = jnp.zeros((seq_len, d_model), jnp.float32)
    pe = pe.at[:, 0::2].set(jnp.sin(position * div_term))
    pe = pe.at[:, 1::2].set(jnp.cos(position * div_term))
    return pe[None, :, :]


if __name__ == "__main__":
    key = jax.random.PRNGKey(0)

    # 1) Small shape matching the module's intended use: batch=2, seq=8, d_model=32.
    batch, seq, d_model = 2, 8, 32
    x = jax.random.normal(key, (batch, seq, d_model), dtype=jnp.float32)
    out = jax.block_until_ready(positional_embedding(x, d_model=d_model, max_len=512))
    assert out.shape == (1, seq, d_model), out.shape
    assert out.dtype == jnp.float32
    assert jnp.allclose(out, _reference_pe(seq, d_model), atol=1e-5, rtol=1e-5)

    # Memoization: a second forward with the same (seq, d_model) hits the cache.
    _ = positional_embedding(x, d_model=d_model)
    assert _build_pe_table.cache_info().hits >= 1

    # 2) Plain lane-dense path (d_model % 128 == 0), simple kernel.
    x2 = jax.random.normal(key, (1, 16, 128), dtype=jnp.float32)
    out2 = jax.block_until_ready(positional_embedding(x2, d_model=128))
    assert jnp.allclose(out2, _reference_pe(16, 128), atol=1e-5, rtol=1e-5)

    # 3) Larger table: exercises the 8-row sin/cos recurrence path.
    x3 = jnp.zeros((1, 512, 256), dtype=jnp.float32)
    out3 = jax.block_until_ready(positional_embedding(x3, d_model=256))
    assert jnp.allclose(out3, _reference_pe(512, 256), atol=3e-5, rtol=1e-4)

    # 4) Non-dividing row count: partial last output block (writeback clipping).
    out4 = jax.block_until_ready(
        _build_pe_table(200, 128, "float32", _force_row_tile=64))
    assert jnp.allclose(out4, _reference_pe(200, 128), atol=3e-5, rtol=1e-4)

    # 5) Lane-sparse fallback (no lane-dense factorization for this d_model/seq).
    x5 = jnp.zeros((1, 7, 10), dtype=jnp.float32)
    out5 = jax.block_until_ready(positional_embedding(x5, d_model=10))
    assert jnp.allclose(out5, _reference_pe(7, 10), atol=1e-5, rtol=1e-5)

    print("KERNEL_OK")
</pallas_src>

<mosaic_0001>
module attributes {stable_mosaic.version = 11 : i64} {
  func.func @_pe_kernel_simple(%arg0: i32, %arg1: memref<1x256xf32, #tpu.memory_space<vmem>>, %arg2: memref<1x256xf32, #tpu.memory_space<vmem>>, %arg3: memref<1x256xf32, #tpu.memory_space<vmem>>) attributes {dimension_semantics = [#tpu.dimension_semantics<parallel>], iteration_bounds = array<i64: 1>, scalar_prefetch = 0 : i64, scratch_operands = 0 : i64, tpu.core_type = #tpu.core_type<tc>, window_params = [{pipeline_mode = #tpu.pipeline_mode<synchronous>, transform_indices = @transform_0, window_bounds = array<i64: 1, 256>}, {pipeline_mode = #tpu.pipeline_mode<synchronous>, transform_indices = @transform_1, window_bounds = array<i64: 1, 256>}, {transform_indices = @transform_2, window_bounds = array<i64: 1, 256>}]} {
    %0 = tpu.iota {dimensions = array<i32: 0>} : vector<1x1xi32>
    %c1_i32 = arith.constant 1 : i32
    %1 = arith.muli %arg0, %c1_i32 : i32
    %2 = vector.broadcast %1 : i32 to vector<1x1xi32>
    %3 = arith.addi %0, %2 : vector<1x1xi32>
    %4 = arith.sitofp %3 : vector<1x1xi32> to vector<1x1xf32>
    %c0 = arith.constant 0 : index
    %c0_0 = arith.constant 0 : index
    %5 = vector.load %arg1[%c0, %c0_0] : memref<1x256xf32, #tpu.memory_space<vmem>>, vector<1x256xf32>
    %6 = vector.broadcast %4 : vector<1x1xf32> to vector<1x256xf32>
    %7 = arith.mulf %6, %5 : vector<1x256xf32>
    %c0_1 = arith.constant 0 : index
    %c0_2 = arith.constant 0 : index
    %8 = vector.load %arg2[%c0_1, %c0_2] : memref<1x256xf32, #tpu.memory_space<vmem>>, vector<1x256xf32>
    %9 = arith.addf %7, %8 : vector<1x256xf32>
    %10 = math.sin %9 : vector<1x256xf32>
    %c0_3 = arith.constant 0 : index
    %c0_4 = arith.constant 0 : index
    %11 = vector.load %arg3[%c0_3, %c0_4] : memref<1x256xf32, #tpu.memory_space<vmem>>, vector<1x256xf32>
    tpu.vector_store %arg3[%c0_3, %c0_4], %10 {strides = array<i32>} : memref<1x256xf32, #tpu.memory_space<vmem>>, vector<1x256xf32>,
    return
  }
  func.func @transform_0(%arg0: i32) -> (i32, i32) {
    %c0_i32 = arith.constant 0 : i32
    %c0_i32_0 = arith.constant 0 : i32
    %c0_i32_1 = arith.constant 0 : i32
    return %c0_i32, %c0_i32_0 : i32, i32
  }
  func.func @transform_1(%arg0: i32) -> (i32, i32) {
    %c0_i32 = arith.constant 0 : i32
    %c0_i32_0 = arith.constant 0 : i32
    %c0_i32_1 = arith.constant 0 : i32
    return %c0_i32, %c0_i32_0 : i32, i32
  }
  func.func @transform_2(%arg0: i32) -> (i32, i32) {
    %c0_i32 = arith.constant 0 : i32
    %c0_i32_0 = arith.constant 0 : i32
    return %arg0, %c0_i32 : i32, i32
  }
}

</mosaic_0001>

<llo_original>
// kernel: tpu_custom_call.1
$region0: #{tpu_custom_call.1}
  #allocation0 [shape = 'u32[]', space=smem, size = 0x4, offset = 0x4, fixed_abs, tag = 'smem constant byte address 0x4 - core index']
  #allocation1 [shape = 'u32[72,128]{1,0:T(1,128)}', space=vmem, size = 0x9000, scoped, tag = 'internal scratch']
  %s0 = inlined_call_operand.hbm [shape: f32[1,256], index: 0, kind: input, shape index: {}]
  %s1 = inlined_call_operand.hbm [shape: f32[1,256], index: 1, kind: input, shape index: {}]
  %s2 = inlined_call_operand.hbm [shape: f32[1,256], index: 2, kind: output, shape index: {}]
  %s3 = sld [smem:[#allocation0]]
  $region26: #{tpu_custom_call.1} parent=0
    _
  %s5 = ssub.s32 1, %s3
  %s6 = scalar_select 0, %s5, %s3
  $region1: #{tpu_custom_call.1} parent=0
    #allocation2 [shape = 'u8[1024]{0}', space=vmem, size = 0x400, scoped, tag = 'input window, operand 0, single buffered']
    #allocation3 [shape = 's32[1]{0}', space=sflag, size = 0x4, scoped, tag = 'scoped memory for tpu_custom_call.1']
    #allocation4 [shape = 's32[1]{0}', space=sflag, size = 0x4, scoped, tag = 'scoped memory for tpu_custom_call.1']
    #allocation5 [shape = 'u8[1024]{0}', space=vmem, size = 0x400, scoped, tag = 'input window, operand 1, single buffered']
    #allocation6 [shape = 's32[1]{0}', space=sflag, size = 0x4, scoped, tag = 'scoped memory for tpu_custom_call.1']
    #allocation7 [shape = 'u8[1024]{0}', space=vmem, size = 0x400, scoped, tag = 'output window, operand 0, single buffered']
    %7 = vsyncpa [#allocation3], 0
    %8 = vsyncpa [#allocation6], 0
    %9 = vsyncpa [#allocation4], 0
    // Predicated region
    $region2: #{tpu_custom_call.1} parent=1 // pred_check
      _
    $region3: #{tpu_custom_call.1} parent=1 // pred_check_branch
      %11 = sbr.rel (0) target = $region5
    $region4: #{tpu_custom_call.1} parent=1 // pred_region
      %13 = vsyncadd [#allocation3], 0
      %s15 = sshll.u32 %s0, 4
      %s16 = int_to_ptr.hbm [resolvable:$true] %s15
      %s17 = sshll.u32 [#allocation2], 4
      %s18 = int_to_ptr.vmem [resolvable:$true] %s17
      %20 = dma.hbm_to_vmem [thread:$0]  %s16, 32, %s18, [#allocation3]
    $region5: #{tpu_custom_call.1} parent=1 // pred_fallthru
      _
    // Predicated region
    $region6: #{tpu_custom_call.1} parent=1 // pred_check
      _
    $region7: #{tpu_custom_call.1} parent=1 // pred_check_branch
      %22 = sbr.rel (0) target = $region9
    $region8: #{tpu_custom_call.1} parent=1 // pred_region
      %24 = vsyncadd [#allocation6], 0
      %s26 = sshll.u32 %s1, 4
      %s27 = int_to_ptr.hbm [resolvable:$true] %s26
      %s28 = sshll.u32 [#allocation5], 4
      %s29 = int_to_ptr.vmem [resolvable:$true] %s28
      %31 = dma.hbm_to_vmem [thread:$0]  %s27, 32, %s29, [#allocation6]
    $region9: #{tpu_custom_call.1} parent=1 // pred_fallthru
      _
    // Predicated region
    $region10: #{tpu_custom_call.1} parent=1 // pred_check
      _
    $region11: #{tpu_custom_call.1} parent=1 // pred_check_branch
      %33 = sbr.rel (0) target = $region13
    $region12: #{tpu_custom_call.1} parent=1 // pred_region
      %35 = dma.done [#allocation3], 32
    $region13: #{tpu_custom_call.1} parent=1 // pred_fallthru
      _
    // Predicated region
    $region14: #{tpu_custom_call.1} parent=1 // pred_check
      _
    $region15: #{tpu_custom_call.1} parent=1 // pred_check_branch
      %37 = sbr.rel (0) target = $region17
    $region16: #{tpu_custom_call.1} parent=1 // pred_region
      %39 = dma.done [#allocation6], 32
    $region17: #{tpu_custom_call.1} parent=1 // pred_fallthru
      _
    %v40 = vlaneseq
    %v41 = vshrl.u32 %v40, 7
    %v42 = vstv 0
    %v43 = vadd.s32 %v41, %v42
    %v44 = vcvt.s32.f32 %v43
    %v45 = vld [vmem:[#allocation2] sm:$0x3]
    %v47 = vperm.slane %v45, 0
    %v48 = vperm.slane %v45, 1
    %v51 = vmul.f32 %v44, %v47
    %v52 = vmul.f32 %v44, %v48
    %v53 = vld [vmem:[#allocation5] sm:$0x3]
    %v55 = vperm.slane %v53, 0
    %v56 = vperm.slane %v53, 1
    %v59 = vadd.f32 %v51, %v55
    %v60 = vadd.f32 %v52, %v56
    %v61 = vand.u32 2147483647, %v59
    %vm62 = vcmp.le.f32.partialorder %v61, 0.7853982
    %vm63 = vcmp.lt.s32.totalorder %v59, 0
    %v64 = vand.u32 %v59, 2139095040
    %v65 = vshrl.u32 %v64, 23
    %v66 = vsub.s32 %v65, 127
    %v67 = vand.u32 2147483647, %v59
    %v68 = vand.u32 %v67, 8388607
    %v69 = vor.u32 %v68, 8388608
    %v70 = vsub.s32 0, %v69
    %v71 = vadd.s32 %v66, 1
    %vm72 = vcmp.gt.s32.totalorder %v71, 0
    %v73 = vsel %vm72, %v71, 0
    %v74 = vshrl.u32 %v73, 5
    %v75 = vand.u32 %v73, 31
    %v76 = vsub.s32 32, %v75
    %v77 = vshrl.u32 683565275, %v76
    %v78 = vshll.u32 683565275, %v75
    %v79 = vshrl.u32 2475754826, %v76
    %v80 = vor.u32 %v78, %v79
    %v81 = vshll.u32 2475754826, %v75
    %v82 = vshrl.u32 2131351028, %v76
    %v83 = vor.u32 %v81, %v82
    %v84 = vshll.u32 2131351028, %v75
    %v85 = vshrl.u32 2102212464, %v76
    %v86 = vor.u32 %v84, %v85
    %v87 = vshll.u32 2102212464, %v75
    %v88 = vshrl.u32 920167782, %v76
    %v89 = vor.u32 %v87, %v88
    %v90 = vshll.u32 920167782, %v75
    %v91 = vshrl.u32 1326507024, %v76
    %v92 = vor.u32 %v90, %v91
    %vm93 = vcmp.lt.s32.totalorder %v74, 1
    %vm94 = vcmp.lt.s32.totalorder %v74, 2
    %vm95 = vcmp.lt.s32.totalorder %v74, 3
    %vm96 = vcmp.lt.s32.totalorder %v74, 4
    %v97 = vsel %vm93, %v77, %v80
    %v98 = vsel %vm96, %v86, 2102212464
    %v99 = vsel %vm95, %v83, %v98
    %v100 = vsel %vm94, %v97, %v99
    %v101 = vsel %vm93, %v80, %v83
    %v102 = vsel %vm96, %v89, 920167782
    %v103 = vsel %vm95, %v86, %v102
    %v104 = vsel %vm94, %v101, %v103
    %v105 = vsel %vm93, %v83, %v86
    %v106 = vsel %vm96, %v92, 1326507024
    %v107 = vsel %vm95, %v89, %v106
    %v108 = vsel %vm94, %v105, %v107
    %v109 = vshll.u32 %v69, 8
    %v110 = vand.u32 %v109, 65535
    %v111 = vshrl.u32 %v109, 16
    %v112 = vand.u32 %v108, 65535
    %v113 = vshrl.u32 %v108, 16
    %v114 = vmul.u32 %v110, %v112
    %v115 = vmul.u32 %v110, %v113
    %v116 = vmul.u32 %v111, %v112
    %v117 = vmul.u32 %v111, %v113
    %v118 = vshll.u32 %v115, 16
    %v119 = vshrl.u32 %v115, 16
    %v120 = vshll.u32 %v116, 16
    %v121 = vshrl.u32 %v116, 16
    %vm122 = vc.u32 %v114, %v118
    %v123 = vsel %vm122, 1, 0
    %v124 = vadd.s32 %v114, %v118
    %v125 = vadd.s32 %v117, %v123
    %vm126 = vc.u32 %v124, %v120
    %v127 = vsel %vm126, 1, 0
    %v128 = vadd.s32 %v124, %v120
    %v129 = vadd.s32 %v125, %v127
    %v130 = vadd.s32 %v129, %v119
    %v131 = vadd.s32 %v130, %v121
    %v132 = vand.u32 %v109, 65535
    %v133 = vshrl.u32 %v109, 16
    %v134 = vand.u32 %v104, 65535
    %v135 = vshrl.u32 %v104, 16
    %v136 = vmul.u32 %v132, %v134
    %v137 = vmul.u32 %v132, %v135
    %v138 = vmul.u32 %v133, %v134
    %v139 = vmul.u32 %v133, %v135
    %v140 = vshll.u32 %v137, 16
    %v141 = vshrl.u32 %v137, 16
    %v142 = vshll.u32 %v138, 16
    %v143 = vshrl.u32 %v138, 16
    %vm144 = vc.u32 %v136, %v140
    %v145 = vsel %vm144, 1, 0
    %v146 = vadd.s32 %v136, %v140
    %v147 = vadd.s32 %v139, %v145
    %vm148 = vc.u32 %v146, %v142
    %v149 = vsel %vm148, 1, 0
    %v150 = vadd.s32 %v146, %v142
    %v151 = vadd.s32 %v147, %v149
    %v152 = vadd.s32 %v151, %v141
    %v153 = vadd.s32 %v152, %v143
    %v154 = vmul.u32 %v109, %v100
    %v155 = vadd.s32 %v131, %v150
    %vm156 = vc.u32 %v131, %v150
    %v157 = vadd.s32 %v153, 1
    %v158 = vsel %vm156, %v157, %v153
    %v159 = vadd.s32 %v154, %v158
    %v160 = vadd.s32 %v159, 536870912
    %v161 = vshrl.u32 %v160, 30
    %v162 = vshll.u32 %v161, 30
    %v163 = vsub.s32 %v159, %v162
    %vm164 = vcmp.lt.s32.totalorder %v163, 0
    %v165 = vsub.s32 0, %v163
    %v166 = vsel %vm164, %v165, %v163
    %v167 = vclz %v166
    %v168 = vsub.s32 %v167, 2
    %vm169 = vcmp.gt.s32.totalorder 0, %v168
    %v170 = vsel %vm169, 0, %v168
    %v171 = vsub.s32 32, %v170
    %v172 = vshll.u32 %v163, %v170
    %v173 = vshrl.u32 %v155, %v171
    %v174 = vor.u32 %v172, %v173
    %v175 = vsub.s32 4294967266, %v170
    %v176 = vadd.s32 %v175, 127
    %v177 = vshll.u32 %v176, 23
    %v178 = vor.u32 4788187, %v177
    %v179 = vand.u32 2147483647, %v178
    %v181 = vcvt.s32.f32 %v174
    %v182 = vmul.f32 %v181, %v179
    %v183 = vxor.u32 %v182, 2147483648
    %v184 = vsel %vm63, %v183, %v182
    %v185 = vsub.s32 4, %v161
    %v186 = vsel %vm63, %v185, %v161
    %v187 = vsel %vm62, %v59, %v184
    %v188 = vsel %vm62, 0, %v186
    %v189 = vmul.f32 %v187, %v187
    %v190 = vmul.f32 %v189, -0.001358992
    %v191 = vadd.f32 %v190, 0.041655596
    %v192 = vmul.f32 %v189, %v191
    %v193 = vadd.f32 %v192, -0.4999988
    %v194 = vmul.f32 %v189, %v193
    %v195 = vadd.f32 1.0, %v194
    %v196 = vmul.f32 %v187, %v187
    %v197 = vmul.f32 %v196, -0.00019511016
    %v198 = vadd.f32 %v197, 0.008332121
    %v199 = vmul.f32 %v196, %v198
    %v200 = vadd.f32 %v199, -0.16666654
    %v201 = vmul.f32 %v196, %v200
    %v202 = vadd.f32 %v201, 1.0
    %v203 = vmul.f32 %v202, %v187
    %vm204 = vweird.f32 %v59
    %v205 = vadd.s32 %v188, 3
    %v206 = vand.u32 %v205, 3
    %vm207 = vcmp.lt.s32.totalorder %v206, 2
    %vm208 = vcmp.eq.s32.totalorder %v206, 0
    %v209 = vxor.u32 %v203, 2147483648
    %v210 = vsel %vm208, %v195, %v209
    %vm211 = vcmp.eq.s32.totalorder %v206, 2
    %v212 = vxor.u32 %v195, 2147483648
    %v213 = vsel %vm211, %v212, %v203
    %v214 = vsel %vm207, %v210, %v213
    %v215 = vsel %vm204, nan, %v214
    %v216 = vand.u32 2147483647, %v60
    %vm217 = vcmp.le.f32.partialorder %v216, 0.7853982
    %vm218 = vcmp.lt.s32.totalorder %v60, 0
    %v219 = vand.u32 %v60, 2139095040
    %v220 = vshrl.u32 %v219, 23
    %v221 = vsub.s32 %v220, 127
    %v222 = vand.u32 2147483647, %v60
    %v223 = vand.u32 %v222, 8388607
    %v224 = vor.u32 %v223, 8388608
    %v225 = vsub.s32 0, %v224
    %v226 = vadd.s32 %v221, 1
    %vm227 = vcmp.gt.s32.totalorder %v226, 0
    %v228 = vsel %vm227, %v226, 0
    %v229 = vshrl.u32 %v228, 5
    %v230 = vand.u32 %v228, 31
    %v231 = vsub.s32 32, %v230
    %v232 = vshrl.u32 683565275, %v231
    %v233 = vshll.u32 683565275, %v230
    %v234 = vshrl.u32 2475754826, %v231
    %v235 = vor.u32 %v233, %v234
    %v236 = vshll.u32 2475754826, %v230
    %v237 = vshrl.u32 2131351028, %v231
    %v238 = vor.u32 %v236, %v237
    %v239 = vshll.u32 2131351028, %v230
    %v240 = vshrl.u32 2102212464, %v231
    %v241 = vor.u32 %v239, %v240
    %v242 = vshll.u32 2102212464, %v230
    %v243 = vshrl.u32 920167782, %v231
    %v244 = vor.u32 %v242, %v243
    %v245 = vshll.u32 920167782, %v230
    %v246 = vshrl.u32 1326507024, %v231
    %v247 = vor.u32 %v245, %v246
    %vm248 = vcmp.lt.s32.totalorder %v229, 1
    %vm249 = vcmp.lt.s32.totalorder %v229, 2
    %vm250 = vcmp.lt.s32.totalorder %v229, 3
    %vm251 = vcmp.lt.s32.totalorder %v229, 4
    %v252 = vsel %vm248, %v232, %v235
    %v253 = vsel %vm251, %v241, 2102212464
    %v254 = vsel %vm250, %v238, %v253
    %v255 = vsel %vm249, %v252, %v254
    %v256 = vsel %vm248, %v235, %v238
    %v257 = vsel %vm251, %v244, 920167782
    %v258 = vsel %vm250, %v241, %v257
    %v259 = vsel %vm249, %v256, %v258
    %v260 = vsel %vm248, %v238, %v241
    %v261 = vsel %vm251, %v247, 1326507024
    %v262 = vsel %vm250, %v244, %v261
    %v263 = vsel %vm249, %v260, %v262
    %v264 = vshll.u32 %v224, 8
    %v265 = vand.u32 %v264, 65535
    %v266 = vshrl.u32 %v264, 16
    %v267 = vand.u32 %v263, 65535
    %v268 = vshrl.u32 %v263, 16
    %v269 = vmul.u32 %v265, %v267
    %v270 = vmul.u32 %v265, %v268
    %v271 = vmul.u32 %v266, %v267
    %v272 = vmul.u32 %v266, %v268
    %v273 = vshll.u32 %v270, 16
    %v274 = vshrl.u32 %v270, 16
    %v275 = vshll.u32 %v271, 16
    %v276 = vshrl.u32 %v271, 16
    %vm277 = vc.u32 %v269, %v273
    %v278 = vsel %vm277, 1, 0
    %v279 = vadd.s32 %v269, %v273
    %v280 = vadd.s32 %v272, %v278
    %vm281 = vc.u32 %v279, %v275
    %v282 = vsel %vm281, 1, 0
    %v283 = vadd.s32 %v279, %v275
    %v284 = vadd.s32 %v280, %v282
    %v285 = vadd.s32 %v284, %v274
    %v286 = vadd.s32 %v285, %v276
    %v287 = vand.u32 %v264, 65535
    %v288 = vshrl.u32 %v264, 16
    %v289 = vand.u32 %v259, 65535
    %v290 = vshrl.u32 %v259, 16
    %v291 = vmul.u32 %v287, %v289
    %v292 = vmul.u32 %v287, %v290
    %v293 = vmul.u32 %v288, %v289
    %v294 = vmul.u32 %v288, %v290
    %v295 = vshll.u32 %v292, 16
    %v296 = vshrl.u32 %v292, 16
    %v297 = vshll.u32 %v293, 16
    %v298 = vshrl.u32 %v293, 16
    %vm299 = vc.u32 %v291, %v295
    %v300 = vsel %vm299, 1, 0
    %v301 = vadd.s32 %v291, %v295
    %v302 = vadd.s32 %v294, %v300
    %vm303 = vc.u32 %v301, %v297
    %v304 = vsel %vm303, 1, 0
    %v305 = vadd.s32 %v301, %v297
    %v306 = vadd.s32 %v302, %v304
    %v307 = vadd.s32 %v306, %v296
    %v308 = vadd.s32 %v307, %v298
    %v309 = vmul.u32 %v264, %v255
    %v310 = vadd.s32 %v286, %v305
    %vm311 = vc.u32 %v286, %v305
    %v312 = vadd.s32 %v308, 1
    %v313 = vsel %vm311, %v312, %v308
    %v314 = vadd.s32 %v309, %v313
    %v315 = vadd.s32 %v314, 536870912
    %v316 = vshrl.u32 %v315, 30
    %v317 = vshll.u32 %v316, 30
    %v318 = vsub.s32 %v314, %v317
    %vm319 = vcmp.lt.s32.totalorder %v318, 0
    %v320 = vsub.s32 0, %v318
    %v321 = vsel %vm319, %v320, %v318
    %v322 = vclz %v321
    %v323 = vsub.s32 %v322, 2
    %vm324 = vcmp.gt.s32.totalorder 0, %v323
    %v325 = vsel %vm324, 0, %v323
    %v326 = vsub.s32 32, %v325
    %v327 = vshll.u32 %v318, %v325
    %v328 = vshrl.u32 %v310, %v326
    %v329 = vor.u32 %v327, %v328
    %v330 = vsub.s32 4294967266, %v325
    %v331 = vadd.s32 %v330, 127
    %v332 = vshll.u32 %v331, 23
    %v333 = vor.u32 4788187, %v332
    %v334 = vand.u32 2147483647, %v333
    %v336 = vcvt.s32.f32 %v329
    %v337 = vmul.f32 %v336, %v334
    %v338 = vxor.u32 %v337, 2147483648
    %v339 = vsel %vm218, %v338, %v337
    %v340 = vsub.s32 4, %v316
    %v341 = vsel %vm218, %v340, %v316
    %v342 = vsel %vm217, %v60, %v339
    %v343 = vsel %vm217, 0, %v341
    %v344 = vmul.f32 %v342, %v342
    %v345 = vmul.f32 %v344, -0.001358992
    %v346 = vadd.f32 %v345, 0.041655596
    %v347 = vmul.f32 %v344, %v346
    %v348 = vadd.f32 %v347, -0.4999988
    %v349 = vmul.f32 %v344, %v348
    %v350 = vadd.f32 1.0, %v349
    %v351 = vmul.f32 %v342, %v342
    %v352 = vmul.f32 %v351, -0.00019511016
    %v353 = vadd.f32 %v352, 0.008332121
    %v354 = vmul.f32 %v351, %v353
    %v355 = vadd.f32 %v354, -0.16666654
    %v356 = vmul.f32 %v351, %v355
    %v357 = vadd.f32 %v356, 1.0
    %v358 = vmul.f32 %v357, %v342
    %vm359 = vweird.f32 %v60
    %v360 = vadd.s32 %v343, 3
    %v361 = vand.u32 %v360, 3
    %vm362 = vcmp.lt.s32.totalorder %v361, 2
    %vm363 = vcmp.eq.s32.totalorder %v361, 0
    %v364 = vxor.u32 %v358, 2147483648
    %v365 = vsel %vm363, %v350, %v364
    %vm366 = vcmp.eq.s32.totalorder %v361, 2
    %v367 = vxor.u32 %v350, 2147483648
    %v368 = vsel %vm366, %v367, %v358
    %v369 = vsel %vm362, %v365, %v368
    %v370 = vsel %vm359, nan, %v369
    %v373 = vrot.slane %v370, 7
    %vm374 = vcmask 1040384
    %v375 = vsel %vm374, %v215, %v373
    %v377 = vlaneseq
    %vm378 = vcmp.ge.s32.totalorder %v377, 0
    %vm379 = vcmp.lt.s32.totalorder %v377, 256
    %vm380 = vmand %vm378, %vm379
    %381 = vst.msk [vmem:[#allocation7] sm:$0x3] %vm380, %v375
    // Predicated region
    $region18: #{tpu_custom_call.1} parent=1 // pred_check
      _
    $region19: #{tpu_custom_call.1} parent=1 // pred_check_branch
      %383 = sbr.rel (0) target = $region21
    $region20: #{tpu_custom_call.1} parent=1 // pred_region
      %385 = vsyncadd [#allocation4], 0
      %s387 = sshll.u32 [#allocation7], 4
      %s388 = int_to_ptr.vmem [resolvable:$true] %s387
      %s389 = sshll.u32 %s2, 4
      %s390 = int_to_ptr.hbm [resolvable:$true] %s389
      %392 = dma.vmem_to_hbm [thread:$0]  %s388, 32, %s390, [#allocation4]
    $region21: #{tpu_custom_call.1} parent=1 // pred_fallthru
      _
    // Predicated region
    $region22: #{tpu_custom_call.1} parent=1 // pred_check
      _
    $region23: #{tpu_custom_call.1} parent=1 // pred_check_branch
      %394 = sbr.rel (0) target = $region25
    $region24: #{tpu_custom_call.1} parent=1 // pred_region
      %396 = dma.done [#allocation4], 32
    $region25: #{tpu_custom_call.1} parent=1 // pred_fallthru
      _
    %397 = vsyncpa [#allocation3], 1
    %398 = vsyncpa [#allocation6], 1
    %399 = vsyncpa [#allocation4], 1

</llo_original>
